<compile_context>
chip_gen: v7x
topology: tpu7x:2x2x1
jax: 0.10.0
libtpu: 0.0.40
codegen_flags: <defaults>
</compile_context>

<pallas_src>
import functools

import jax
import jax.numpy as jnp
from jax import lax
from jax.experimental import pallas as pl
from jax.experimental.pallas import tpu as pltpu


def _round_up(x, m):
    return (x + m - 1) // m * m


def _vmem_budget_bytes():
    """Generation-aware usable-VMEM estimate (leave headroom below physical)."""
    try:
        cap = int(pltpu.get_tpu_info().vmem_capacity_bytes)
    except Exception:  # interpret mode / non-TPU trace environments
        cap = 64 * 1024 * 1024  # conservative: v7x per-TC capacity
    return max(min(cap - 8 * 1024 * 1024, int(cap * 0.85)), 8 * 1024 * 1024)


def _assoc_kernel(xs_ref, xt_ref, psts_ref, pt_ref, w_acc, *,
                  ns, nt, epilogue_dtype):
    k = pl.program_id(0)
    nk = pl.num_programs(0)

    # Partial W contribution: xs_chunk @ xt_chunk.T in "NT" form — neither
    # xt.T nor W.T is ever materialized through the XLU.
    w_part = lax.dot_general(
        xs_ref[...], xt_ref[...],
        dimension_numbers=(((1,), (1,)), ((), ())),
        preferred_element_type=jnp.float32,
    )

    @pl.when(k == 0)
    def _first():
        w_acc[...] = w_part          # skip zero-init + reload on step 0

    @pl.when(k > 0)
    def _accum():
        w_acc[...] += w_part

    @pl.when(k == nk - 1)
    def _epilogue():
        W = w_acc[...]                                # (Ns_p, Nt_p) f32
        ns_p, nt_p = W.shape

        # 1-D iota masks; jnp.where broadcasts them (no (Ns_p, Nt_p) int32
        # temporaries in the epilogue).
        col_valid = lax.broadcasted_iota(jnp.int32, (1, nt_p), 1) < nt
        row_valid = lax.broadcasted_iota(jnp.int32, (ns_p, 1), 0) < ns

        # ---- Pst = softmax(W, axis=1) over the valid Nt columns ----
        w_row = jnp.where(col_valid, W, -jnp.inf) if nt_p != nt else W
        m_row = jnp.max(w_row, axis=1, keepdims=True)
        e_row = jnp.exp(w_row - m_row)
        pst = e_row / jnp.sum(e_row, axis=1, keepdims=True)   # exact divide

        # ---- q[s, t] = Pts[t, s] = softmax(W, axis=0) over valid Ns rows,
        #      computed directly in (Ns_p, Nt_p) layout (no W.T materialized).
        w_col = jnp.where(row_valid, W, -jnp.inf) if ns_p != ns else W
        m_col = jnp.max(w_col, axis=0, keepdims=True)
        e_col = jnp.exp(w_col - m_col)
        q = e_col / jnp.sum(e_col, axis=0, keepdims=True)      # exact divide

        # Psts = Pst @ Pts = Pst @ q.T  ("NT" contraction on the MXU).
        # Padded Nt columns of pst are exactly 0, so q's padded columns never
        # contaminate the result; padded Ns rows land outside the slice.
        psts_ref[...] = lax.dot_general(
            pst.astype(epilogue_dtype), q.astype(epilogue_dtype),
            dimension_numbers=(((1,), (1,)), ((), ())),
            preferred_element_type=jnp.float32,
        )

        # Pt = mean over the valid Ns rows of Pst (padded Nt columns are 0).
        pst_valid = jnp.where(row_valid, pst, 0.0) if ns_p != ns else pst
        pt_ref[...] = jnp.sum(pst_valid, axis=0, keepdims=True) * (1.0 / ns)


def association_matrix(xs, xt, *, block_k=None, epilogue_bf16=None):
    """xs: (Ns, K, ...), xt: (Nt, K, ...) -> (Psts (Ns, Ns), Pt (1, Nt))."""
    ns = xs.shape[0]
    nt = xt.shape[0]
    xs2 = xs.reshape(ns, -1)          # keep native dtype (no wrapper up-cast)
    xt2 = xt.reshape(nt, -1)
    d = xs2.shape[1]
    assert xt2.shape[1] == d, "feature dims of xs and xt must match"

    itemsize = xs2.dtype.itemsize
    if epilogue_bf16 is None:
        # Only drop the epilogue matmul to bf16 when the caller already feeds
        # bf16 inputs (they have accepted ~1e-3 precision).
        epilogue_bf16 = xs2.dtype == jnp.bfloat16
    epilogue_dtype = jnp.bfloat16 if epilogue_bf16 else jnp.float32

    # Lane/sublane-dense padding: both Ns and Nt rounded to 128 so the Psts
    # writeback and the second matmul's output N-dimension are lane-dense.
    ns_p = _round_up(ns, 128)
    nt_p = _round_up(nt, 128)

    budget = _vmem_budget_bytes()

    def vmem_need(bk):
        return (2 * (ns_p + nt_p) * bk * itemsize     # double-buffered chunks
                + ns_p * nt_p * 4                     # W accumulator scratch
                + 6 * ns_p * nt_p * 4                 # epilogue temporaries
                + 2 * ns_p * ns_p * 4                 # resident Psts output
                + 2 * nt_p * 4)                       # resident Pt output

    if block_k is None:
        d_aligned = _round_up(d, 128)                 # MXU-friendly multiple
        base_bk = 1024 if itemsize <= 2 else 512
        if vmem_need(d_aligned) <= budget:
            block_k = d_aligned                       # single K step (nk == 1)
        else:
            block_k = base_bk
            while block_k > 128 and vmem_need(block_k) > budget:
                block_k //= 2

    if vmem_need(block_k) > budget:
        # TODO(synk): replace with the two-pass row-tiled epilogue for W that
        # does not fit VMEM instead of erroring out.
        raise ValueError(
            f"AssociationMatrix single-pass kernel needs ~{vmem_need(block_k)}"
            f" bytes of VMEM but only ~{budget} are available; reduce Ns*Nt.")

    d_p = _round_up(d, block_k)
    if (ns_p, d_p) != (ns, d):
        xs2 = jnp.pad(xs2, ((0, ns_p - ns), (0, d_p - d)))
    if (nt_p, d_p) != (nt, d):
        xt2 = jnp.pad(xt2, ((0, nt_p - nt), (0, d_p - d)))
    nk = d_p // block_k

    vmem_limit = int(min(budget, max(32 * 1024 * 1024, 2 * vmem_need(block_k))))

    kernel = functools.partial(
        _assoc_kernel, ns=ns, nt=nt, epilogue_dtype=epilogue_dtype)
    psts_p, pt_p = pl.pallas_call(
        kernel,
        out_shape=(
            jax.ShapeDtypeStruct((ns_p, ns_p), jnp.float32),
            jax.ShapeDtypeStruct((1, nt_p), jnp.float32),
        ),
        grid_spec=pltpu.PrefetchScalarGridSpec(
            num_scalar_prefetch=0,
            grid=(nk,),
            in_specs=[
                pl.BlockSpec((ns_p, block_k), lambda k: (0, k)),
                pl.BlockSpec((nt_p, block_k), lambda k: (0, k)),
            ],
            out_specs=(
                pl.BlockSpec((ns_p, ns_p), lambda k: (0, 0)),
                pl.BlockSpec((1, nt_p), lambda k: (0, 0)),
            ),
            scratch_shapes=[pltpu.VMEM((ns_p, nt_p), jnp.float32)],
        ),
        compiler_params=pltpu.CompilerParams(
            dimension_semantics=("arbitrary",),       # D is a reduction axis
            vmem_limit_bytes=vmem_limit,
        ),
        cost_estimate=pl.CostEstimate(
            flops=2 * ns * nt * d + 2 * ns * ns * nt,
            transcendentals=2 * ns * nt,
            bytes_accessed=(ns + nt) * d * itemsize + (ns * ns + nt) * 4,
        ),
    )(xs2, xt2)

    # Slice off the alignment padding (glue in plain JAX).
    return psts_p[:ns, :ns], pt_p[:, :nt]


def _reference(xs, xt):
    ns, nt = xs.shape[0], xt.shape[0]
    xs2 = xs.reshape(ns, -1).astype(jnp.float32)
    xt2 = xt.reshape(nt, -1).astype(jnp.float32)
    hp = jax.lax.Precision.HIGHEST
    w = jnp.dot(xs2, xt2.T, precision=hp)
    pst = jax.nn.softmax(w, axis=1)
    pts = jax.nn.softmax(w.T, axis=1)
    return jnp.dot(pst, pts, precision=hp), jnp.mean(pst, axis=0, keepdims=True)


if __name__ == "__main__":
    key = jax.random.PRNGKey(0)
    k1, k2 = jax.random.split(key)
    # xs: (Ns=8, K=4, 8, 8), xt: (Nt=16, K=4, 8, 8) -> flattened D = 256.
    xs = jax.random.normal(k1, (8, 4, 8, 8), dtype=jnp.float32) * 0.1
    xt = jax.random.normal(k2, (16, 4, 8, 8), dtype=jnp.float32) * 0.1

    fn = jax.jit(association_matrix)
    psts, pt = fn(xs, xt)
    jax.block_until_ready((psts, pt))

    psts_ref, pt_ref = _reference(xs, xt)
    assert psts.shape == (8, 8) and pt.shape == (1, 16)
    # 1e-3 tolerance on probability-valued outputs: covers any reduced-precision
    # MXU pass differences between the in-kernel and XLA reference matmuls.
    # Softmax math itself is exact f32 (exact divide, no approx reciprocal).
    assert jnp.allclose(psts, psts_ref, atol=1e-3, rtol=1e-3), (
        float(jnp.max(jnp.abs(psts - psts_ref))))
    assert jnp.allclose(pt, pt_ref, atol=1e-3, rtol=1e-3), (
        float(jnp.max(jnp.abs(pt - pt_ref))))

    print("KERNEL_OK")
</pallas_src>

<mosaic_0001>
module attributes {stable_mosaic.version = 11 : i64} {
  func.func @_assoc_kernel(%arg0: i32, %arg1: memref<128x256xf32, #tpu.memory_space<vmem>>, %arg2: memref<128x256xf32, #tpu.memory_space<vmem>>, %arg3: memref<128x128xf32, #tpu.memory_space<vmem>>, %arg4: memref<1x128xf32, #tpu.memory_space<vmem>>, %arg5: memref<128x128xf32, #tpu.memory_space<vmem>>) attributes {dimension_semantics = [#tpu.dimension_semantics<arbitrary>], iteration_bounds = array<i64: 1>, scalar_prefetch = 0 : i64, scratch_operands = 1 : i64, tpu.core_type = #tpu.core_type<tc>, window_params = [{transform_indices = @transform_0, window_bounds = array<i64: 128, 256>}, {transform_indices = @transform_1, window_bounds = array<i64: 128, 256>}, {pipeline_mode = #tpu.pipeline_mode<synchronous>, transform_indices = @transform_2, window_bounds = array<i64: 128, 128>}, {pipeline_mode = #tpu.pipeline_mode<synchronous>, transform_indices = @transform_3, window_bounds = array<i64: 1, 128>}]} {
    %c0 = arith.constant 0 : index
    %c0_0 = arith.constant 0 : index
    %0 = vector.load %arg1[%c0, %c0_0] : memref<128x256xf32, #tpu.memory_space<vmem>>, vector<128x256xf32>
    %c0_1 = arith.constant 0 : index
    %c0_2 = arith.constant 0 : index
    %1 = vector.load %arg2[%c0_1, %c0_2] : memref<128x256xf32, #tpu.memory_space<vmem>>, vector<128x256xf32>
    %cst = arith.constant dense<0.000000e+00> : vector<128x128xf32>
    %2 = tpu.matmul %0, %1, %cst {dimension_numbers = #tpu.dot_dimension_numbers<[1], [1], [0], [0], [0, 0, 1, 0], [], []>} : vector<128x256xf32>, vector<128x256xf32>, vector<128x128xf32> -> vector<128x128xf32>
    %c0_i32 = arith.constant 0 : i32
    %3 = arith.cmpi eq, %arg0, %c0_i32 : i32
    %4 = arith.extui %3 : i1 to i32
    %c0_i32_3 = arith.constant 0 : i32
    %5 = arith.cmpi ne, %4, %c0_i32_3 : i32
    scf.if %5 {
      %c0_8 = arith.constant 0 : index
      %c0_9 = arith.constant 0 : index
      %12 = vector.load %arg5[%c0_8, %c0_9] : memref<128x128xf32, #tpu.memory_space<vmem>>, vector<128x128xf32>
      tpu.vector_store %arg5[%c0_8, %c0_9], %2 {strides = array<i32>} : memref<128x128xf32, #tpu.memory_space<vmem>>, vector<128x128xf32>,
    } else {
    }
    %c0_i32_4 = arith.constant 0 : i32
    %6 = arith.cmpi sgt, %arg0, %c0_i32_4 : i32
    %7 = arith.extui %6 : i1 to i32
    %c0_i32_5 = arith.constant 0 : i32
    %8 = arith.cmpi ne, %7, %c0_i32_5 : i32
    scf.if %8 {
      %c0_8 = arith.constant 0 : index
      %c0_9 = arith.constant 0 : index
      %12 = vector.load %arg5[%c0_8, %c0_9] : memref<128x128xf32, #tpu.memory_space<vmem>>, vector<128x128xf32>
      %13 = arith.addf %12, %2 : vector<128x128xf32>
      %c0_10 = arith.constant 0 : index
      %c0_11 = arith.constant 0 : index
      %14 = vector.load %arg5[%c0_10, %c0_11] : memref<128x128xf32, #tpu.memory_space<vmem>>, vector<128x128xf32>
      tpu.vector_store %arg5[%c0_10, %c0_11], %13 {strides = array<i32>} : memref<128x128xf32, #tpu.memory_space<vmem>>, vector<128x128xf32>,
    } else {
    }
    %c0_i32_6 = arith.constant 0 : i32
    %9 = arith.cmpi eq, %arg0, %c0_i32_6 : i32
    %10 = arith.extui %9 : i1 to i32
    %c0_i32_7 = arith.constant 0 : i32
    %11 = arith.cmpi ne, %10, %c0_i32_7 : i32
    scf.if %11 {
      %c0_8 = arith.constant 0 : index
      %c0_9 = arith.constant 0 : index
      %12 = vector.load %arg5[%c0_8, %c0_9] : memref<128x128xf32, #tpu.memory_space<vmem>>, vector<128x128xf32>
      %13 = tpu.iota {dimensions = array<i32: 1>} : vector<1x128xi32>
      %c16_i32 = arith.constant 16 : i32
      %14 = vector.broadcast %c16_i32 : i32 to vector<1x128xi32>
      %15 = arith.cmpi slt, %13, %14 : vector<1x128xi32>
      %16 = tpu.iota {dimensions = array<i32: 0>} : vector<128x1xi32>
      %c8_i32 = arith.constant 8 : i32
      %17 = vector.broadcast %c8_i32 : i32 to vector<128x1xi32>
      %18 = arith.cmpi slt, %16, %17 : vector<128x1xi32>
      %cst_10 = arith.constant 0xFF800000 : f32
      %19 = vector.shape_cast %15 : vector<1x128xi1> to vector<1x128xi1>
      %20 = vector.broadcast %19 : vector<1x128xi1> to vector<128x128xi1>
      %21 = vector.broadcast %cst_10 : f32 to vector<128x128xf32>
      %22 = arith.select %20, %12, %21 : vector<128x128xi1>, vector<128x128xf32>
      %cst_11 = arith.constant dense<0xFF800000> : vector<128xf32>
      %23 = vector.multi_reduction <maximumf>, %22, %cst_11 [1] : vector<128x128xf32> to vector<128xf32>
      %24 = vector.shape_cast %23 : vector<128xf32> to vector<128x1xf32>
      %25 = vector.broadcast %24 : vector<128x1xf32> to vector<128x128xf32>
      %26 = arith.subf %22, %25 : vector<128x128xf32>
      %27 = math.exp %26 : vector<128x128xf32>
      %cst_12 = arith.constant dense<0.000000e+00> : vector<128xf32>
      %28 = vector.multi_reduction <add>, %27, %cst_12 [1] : vector<128x128xf32> to vector<128xf32>
      %29 = vector.shape_cast %28 : vector<128xf32> to vector<128x1xf32>
      %30 = vector.broadcast %29 : vector<128x1xf32> to vector<128x128xf32>
      %31 = arith.divf %27, %30 : vector<128x128xf32>
      %cst_13 = arith.constant 0xFF800000 : f32
      %32 = vector.shape_cast %18 : vector<128x1xi1> to vector<128x1xi1>
      %33 = vector.broadcast %32 : vector<128x1xi1> to vector<128x128xi1>
      %34 = vector.broadcast %cst_13 : f32 to vector<128x128xf32>
      %35 = arith.select %33, %12, %34 : vector<128x128xi1>, vector<128x128xf32>
      %cst_14 = arith.constant dense<0xFF800000> : vector<128xf32>
      %36 = vector.multi_reduction <maximumf>, %35, %cst_14 [0] : vector<128x128xf32> to vector<128xf32>
      %37 = vector.shape_cast %36 : vector<128xf32> to vector<1x128xf32>
      %38 = vector.broadcast %37 : vector<1x128xf32> to vector<128x128xf32>
      %39 = arith.subf %35, %38 : vector<128x128xf32>
      %40 = math.exp %39 : vector<128x128xf32>
      %cst_15 = arith.constant dense<0.000000e+00> : vector<128xf32>
      %41 = vector.multi_reduction <add>, %40, %cst_15 [0] : vector<128x128xf32> to vector<128xf32>
      %42 = vector.shape_cast %41 : vector<128xf32> to vector<1x128xf32>
      %43 = vector.broadcast %42 : vector<1x128xf32> to vector<128x128xf32>
      %44 = arith.divf %40, %43 : vector<128x128xf32>
      %cst_16 = arith.constant dense<0.000000e+00> : vector<128x128xf32>
      %45 = tpu.matmul %31, %44, %cst_16 {dimension_numbers = #tpu.dot_dimension_numbers<[1], [1], [0], [0], [0, 0, 1, 0], [], []>} : vector<128x128xf32>, vector<128x128xf32>, vector<128x128xf32> -> vector<128x128xf32>
      %c0_17 = arith.constant 0 : index
      %c0_18 = arith.constant 0 : index
      %46 = vector.load %arg3[%c0_17, %c0_18] : memref<128x128xf32, #tpu.memory_space<vmem>>, vector<128x128xf32>
      tpu.vector_store %arg3[%c0_17, %c0_18], %45 {strides = array<i32>} : memref<128x128xf32, #tpu.memory_space<vmem>>, vector<128x128xf32>,
      %cst_19 = arith.constant 0.000000e+00 : f32
      %47 = vector.shape_cast %18 : vector<128x1xi1> to vector<128x1xi1>
      %48 = vector.broadcast %47 : vector<128x1xi1> to vector<128x128xi1>
      %49 = vector.broadcast %cst_19 : f32 to vector<128x128xf32>
      %50 = arith.select %48, %31, %49 : vector<128x128xi1>, vector<128x128xf32>
      %cst_20 = arith.constant dense<0.000000e+00> : vector<128xf32>
      %51 = vector.multi_reduction <add>, %50, %cst_20 [0] : vector<128x128xf32> to vector<128xf32>
      %52 = vector.shape_cast %51 : vector<128xf32> to vector<1x128xf32>
      %cst_21 = arith.constant 1.250000e-01 : f32
      %53 = vector.broadcast %cst_21 : f32 to vector<1x128xf32>
      %54 = arith.mulf %52, %53 : vector<1x128xf32>
      %c0_22 = arith.constant 0 : index
      %c0_23 = arith.constant 0 : index
      %55 = vector.load %arg4[%c0_22, %c0_23] : memref<1x128xf32, #tpu.memory_space<vmem>>, vector<1x128xf32>
      tpu.vector_store %arg4[%c0_22, %c0_23], %54 {strides = array<i32>} : memref<1x128xf32, #tpu.memory_space<vmem>>, vector<1x128xf32>,
    } else {
    }
    return
  }
  func.func @transform_0(%arg0: i32) -> (i32, i32) {
    %c0_i32 = arith.constant 0 : i32
    %c0_i32_0 = arith.constant 0 : i32
    return %c0_i32, %arg0 : i32, i32
  }
  func.func @transform_1(%arg0: i32) -> (i32, i32) {
    %c0_i32 = arith.constant 0 : i32
    %c0_i32_0 = arith.constant 0 : i32
    return %c0_i32, %arg0 : i32, i32
  }
  func.func @transform_2(%arg0: i32) -> (i32, i32) {
    %c0_i32 = arith.constant 0 : i32
    %c0_i32_0 = arith.constant 0 : i32
    %c0_i32_1 = arith.constant 0 : i32
    return %c0_i32, %c0_i32_0 : i32, i32
  }
  func.func @transform_3(%arg0: i32) -> (i32, i32) {
    %c0_i32 = arith.constant 0 : i32
    %c0_i32_0 = arith.constant 0 : i32
    %c0_i32_1 = arith.constant 0 : i32
    return %c0_i32, %c0_i32_0 : i32, i32
  }
}

</mosaic_0001>

<llo_original>
// kernel: association_matrix.1
$region0: #{association_matrix.1}
  #allocation0 [shape = 'u32[]', space=smem, size = 0x4, offset = 0x4, fixed_abs, tag = 'smem constant byte address 0x4 - core index']
  #allocation1 [shape = 'u32[144,128]{1,0:T(1,128)}', space=vmem, size = 0x12000, scoped, tag = 'internal scratch']
  #allocation2 [shape = 'f32[128,128]{1,0:T(8,128)}', space=vmem, size = 0x10000, scoped, tag = 'scratch operand']
  %s0 = inlined_call_operand.vmem [shape: f32[128,256], index: 0, kind: input, shape index: {}]
  %s1 = inlined_call_operand.vmem [shape: f32[128,256], index: 1, kind: input, shape index: {}]
  %s2 = inlined_call_operand.vmem [shape: f32[128,128], index: 2, kind: output, shape index: {0}]
  %s3 = inlined_call_operand.hbm [shape: f32[1,128], index: 3, kind: output, shape index: {1}]
  %4 = xla_tuple %s2, %s3
  %s5 = sld [smem:[#allocation0]]
  $region38: #{association_matrix.1} parent=0
    _
  %s7 = ssub.s32 1, %s5
  %s8 = scalar_select 0, %s7, %s5
  $region1: #{association_matrix.1} parent=0
    #allocation3 [shape = 'u8[512]{0}', space=vmem, size = 0x400, scoped, tag = 'output window, operand 1, single buffered']
    #allocation4 [shape = 's32[1]{0}', space=sflag, size = 0x4, scoped, tag = 'scoped memory for association_matrix.1']
    %9 = vsyncpa [#allocation4], 0
    // Predicated region
    $region2: #{association_matrix.1} parent=1 // pred_check
      _
    $region3: #{association_matrix.1} parent=1 // pred_check_branch
      %11 = sbr.rel (0) target = $region5
    $region4: #{association_matrix.1} parent=1 // pred_region
      _
    $region5: #{association_matrix.1} parent=1 // pred_fallthru
      _
    // Predicated region
    $region6: #{association_matrix.1} parent=1 // pred_check
      _
    $region7: #{association_matrix.1} parent=1 // pred_check_branch
      %13 = sbr.rel (0) target = $region9
    $region8: #{association_matrix.1} parent=1 // pred_region
      _
    $region9: #{association_matrix.1} parent=1 // pred_fallthru
      _
    %v14 = vld [vmem:[%s0] sm:$0xff]
    %v15 = vld [vmem:[%s0 + $0x8] sm:$0xff]
    %v16 = vld [vmem:[%s0 + $0x10] sm:$0xff]
    %v17 = vld [vmem:[%s0 + $0x18] sm:$0xff]
    %v18 = vld [vmem:[%s0 + $0x20] sm:$0xff]
    %v19 = vld [vmem:[%s0 + $0x28] sm:$0xff]
    %v20 = vld [vmem:[%s0 + $0x30] sm:$0xff]
    %v21 = vld [vmem:[%s0 + $0x38] sm:$0xff]
    %v22 = vld [vmem:[%s0 + $0x40] sm:$0xff]
    %v23 = vld [vmem:[%s0 + $0x48] sm:$0xff]
    %v24 = vld [vmem:[%s0 + $0x50] sm:$0xff]
    %v25 = vld [vmem:[%s0 + $0x58] sm:$0xff]
    %v26 = vld [vmem:[%s0 + $0x60] sm:$0xff]
    %v27 = vld [vmem:[%s0 + $0x68] sm:$0xff]
    %v28 = vld [vmem:[%s0 + $0x70] sm:$0xff]
    %v29 = vld [vmem:[%s0 + $0x78] sm:$0xff]
    %v30 = vld [vmem:[%s0 + $0x80] sm:$0xff]
    %v31 = vld [vmem:[%s0 + $0x88] sm:$0xff]
    %v32 = vld [vmem:[%s0 + $0x90] sm:$0xff]
    %v33 = vld [vmem:[%s0 + $0x98] sm:$0xff]
    %v34 = vld [vmem:[%s0 + $0xa0] sm:$0xff]
    %v35 = vld [vmem:[%s0 + $0xa8] sm:$0xff]
    %v36 = vld [vmem:[%s0 + $0xb0] sm:$0xff]
    %v37 = vld [vmem:[%s0 + $0xb8] sm:$0xff]
    %v38 = vld [vmem:[%s0 + $0xc0] sm:$0xff]
    %v39 = vld [vmem:[%s0 + $0xc8] sm:$0xff]
    %v40 = vld [vmem:[%s0 + $0xd0] sm:$0xff]
    %v41 = vld [vmem:[%s0 + $0xd8] sm:$0xff]
    %v42 = vld [vmem:[%s0 + $0xe0] sm:$0xff]
    %v43 = vld [vmem:[%s0 + $0xe8] sm:$0xff]
    %v44 = vld [vmem:[%s0 + $0xf0] sm:$0xff]
    %v45 = vld [vmem:[%s0 + $0xf8] sm:$0xff]
    %v46 = vld [vmem:[%s1] sm:$0xff]
    %v47 = vld [vmem:[%s1 + $0x8] sm:$0xff]
    %v48 = vld [vmem:[%s1 + $0x10] sm:$0xff]
    %v49 = vld [vmem:[%s1 + $0x18] sm:$0xff]
    %v50 = vld [vmem:[%s1 + $0x20] sm:$0xff]
    %v51 = vld [vmem:[%s1 + $0x28] sm:$0xff]
    %v52 = vld [vmem:[%s1 + $0x30] sm:$0xff]
    %v53 = vld [vmem:[%s1 + $0x38] sm:$0xff]
    %v54 = vld [vmem:[%s1 + $0x40] sm:$0xff]
    %v55 = vld [vmem:[%s1 + $0x48] sm:$0xff]
    %v56 = vld [vmem:[%s1 + $0x50] sm:$0xff]
    %v57 = vld [vmem:[%s1 + $0x58] sm:$0xff]
    %v58 = vld [vmem:[%s1 + $0x60] sm:$0xff]
    %v59 = vld [vmem:[%s1 + $0x68] sm:$0xff]
    %v60 = vld [vmem:[%s1 + $0x70] sm:$0xff]
    %v61 = vld [vmem:[%s1 + $0x78] sm:$0xff]
    %v62 = vld [vmem:[%s1 + $0x80] sm:$0xff]
    %v63 = vld [vmem:[%s1 + $0x88] sm:$0xff]
    %v64 = vld [vmem:[%s1 + $0x90] sm:$0xff]
    %v65 = vld [vmem:[%s1 + $0x98] sm:$0xff]
    %v66 = vld [vmem:[%s1 + $0xa0] sm:$0xff]
    %v67 = vld [vmem:[%s1 + $0xa8] sm:$0xff]
    %v68 = vld [vmem:[%s1 + $0xb0] sm:$0xff]
    %v69 = vld [vmem:[%s1 + $0xb8] sm:$0xff]
    %v70 = vld [vmem:[%s1 + $0xc0] sm:$0xff]
    %v71 = vld [vmem:[%s1 + $0xc8] sm:$0xff]
    %v72 = vld [vmem:[%s1 + $0xd0] sm:$0xff]
    %v73 = vld [vmem:[%s1 + $0xd8] sm:$0xff]
    %v74 = vld [vmem:[%s1 + $0xe0] sm:$0xff]
    %v75 = vld [vmem:[%s1 + $0xe8] sm:$0xff]
    %v76 = vld [vmem:[%s1 + $0xf0] sm:$0xff]
    %v77 = vld [vmem:[%s1 + $0xf8] sm:$0xff]
    %78 = vmatprep.subr.mxu0 %v47
    %79 = vmatpush1.xpose.msra.mxu0 %v46
    %80 = vmatprep.subr.mxu0 %v49
    %81 = vmatpush1.xpose.msra.mxu0 %v48
    %82 = vmatprep.subr.mxu0 %v51
    %83 = vmatpush1.xpose.msra.mxu0 %v50
    %84 = vmatprep.subr.mxu0 %v53
    %85 = vmatpush1.xpose.msra.mxu0 %v52
    %86 = vmatprep.subr.mxu0 %v55
    %87 = vmatpush1.xpose.msra.mxu0 %v54
    %88 = vmatprep.subr.mxu0 %v57
    %89 = vmatpush1.xpose.msra.mxu0 %v56
    %90 = vmatprep.subr.mxu0 %v59
    %91 = vmatpush1.xpose.msra.mxu0 %v58
    %92 = vmatprep.subr.mxu0 %v61
    %93 = vmatpush1.xpose.msra.mxu0 %v60
    %94 = vmatprep.subr.mxu0 %v63
    %95 = vmatpush1.xpose.msra.mxu0 %v62
    %96 = vmatprep.subr.mxu0 %v65
    %97 = vmatpush1.xpose.msra.mxu0 %v64
    %98 = vmatprep.subr.mxu0 %v67
    %99 = vmatpush1.xpose.msra.mxu0 %v66
    %100 = vmatprep.subr.mxu0 %v69
    %101 = vmatpush1.xpose.msra.mxu0 %v68
    %102 = vmatprep.subr.mxu0 %v71
    %103 = vmatpush1.xpose.msra.mxu0 %v70
    %104 = vmatprep.subr.mxu0 %v73
    %105 = vmatpush1.xpose.msra.mxu0 %v72
    %106 = vmatprep.subr.mxu0 %v75
    %107 = vmatpush1.xpose.msra.mxu0 %v74
    %108 = vmatprep.subr.mxu0 %v77
    %109 = vmatpush1.xpose.msra.mxu0 %v76
    %110 = vmatprep.subr.mxu0 0.0
    %111 = vmatpush1.xpose.msra.mxu0 0.0
    %112 = vmatprep.subr.mxu0 0.0
    %113 = vmatpush1.xpose.msra.mxu0 0.0
    %114 = vmatprep.subr.mxu0 0.0
    %115 = vmatpush1.xpose.msra.mxu0 0.0
    %116 = vmatprep.subr.mxu0 0.0
    %117 = vmatpush1.xpose.msra.mxu0 0.0
    %118 = vmatprep.subr.mxu0 0.0
    %119 = vmatpush1.xpose.msra.mxu0 0.0
    %120 = vmatprep.subr.mxu0 0.0
    %121 = vmatpush1.xpose.msra.mxu0 0.0
    %122 = vmatprep.subr.mxu0 0.0
    %123 = vmatpush1.xpose.msra.mxu0 0.0
    %124 = vmatprep.subr.mxu0 0.0
    %125 = vmatpush1.xpose.msra.mxu0 0.0
    %126 = vmatprep.subr.mxu0 0.0
    %127 = vmatpush1.xpose.msra.mxu0 0.0
    %128 = vmatprep.subr.mxu0 0.0
    %129 = vmatpush1.xpose.msra.mxu0 0.0
    %130 = vmatprep.subr.mxu0 0.0
    %131 = vmatpush1.xpose.msra.mxu0 0.0
    %132 = vmatprep.subr.mxu0 0.0
    %133 = vmatpush1.xpose.msra.mxu0 0.0
    %134 = vmatprep.subr.mxu0 0.0
    %135 = vmatpush1.xpose.msra.mxu0 0.0
    %136 = vmatprep.subr.mxu0 0.0
    %137 = vmatpush1.xpose.msra.mxu0 0.0
    %138 = vmatprep.subr.mxu0 0.0
    %139 = vmatpush1.xpose.msra.mxu0 0.0
    %140 = vmatprep.subr.mxu0 0.0
    %141 = vmatpush1.xpose.msra.mxu0 0.0
    %142 = vmatprep.mubr.f32.mxu0 %v15
    %143 = vmatmul.mubr.f32.gmra.mrb[0].mxu0 %v14
    %v144 = vpop.f32.mrb[0].mxu0
    %v145 = vadd.f32 0.0, %v144
    %v146 = vpop.f32.mrb[0].mxu0
    %147 = vmatprep.mubr.f32.mxu0 %v17
    %148 = vmatmul.mubr.f32.gmra.mrb[0].mxu0 %v16
    %v149 = vpop.f32.mrb[0].mxu0
    %v150 = vadd.f32 0.0, %v149
    %v151 = vpop.f32.mrb[0].mxu0
    %152 = vmatprep.mubr.f32.mxu0 %v19
    %153 = vmatmul.mubr.f32.gmra.mrb[0].mxu0 %v18
    %v154 = vpop.f32.mrb[0].mxu0
    %v155 = vadd.f32 0.0, %v154
    %v156 = vpop.f32.mrb[0].mxu0
    %157 = vmatprep.mubr.f32.mxu0 %v21
    %158 = vmatmul.mubr.f32.gmra.mrb[0].mxu0 %v20
    %v159 = vpop.f32.mrb[0].mxu0
    %v160 = vadd.f32 0.0, %v159
    %v161 = vpop.f32.mrb[0].mxu0
    %162 = vmatprep.mubr.f32.mxu0 %v23
    %163 = vmatmul.mubr.f32.gmra.mrb[0].mxu0 %v22
    %v164 = vpop.f32.mrb[0].mxu0
    %v165 = vadd.f32 0.0, %v164
    %v166 = vpop.f32.mrb[0].mxu0
    %167 = vmatprep.mubr.f32.mxu0 %v25
    %168 = vmatmul.mubr.f32.gmra.mrb[0].mxu0 %v24
    %v169 = vpop.f32.mrb[0].mxu0
    %v170 = vadd.f32 0.0, %v169
    %v171 = vpop.f32.mrb[0].mxu0
    %172 = vmatprep.mubr.f32.mxu0 %v27
    %173 = vmatmul.mubr.f32.gmra.mrb[0].mxu0 %v26
    %v174 = vpop.f32.mrb[0].mxu0
    %v175 = vadd.f32 0.0, %v174
    %v176 = vpop.f32.mrb[0].mxu0
    %177 = vmatprep.mubr.f32.mxu0 %v29
    %178 = vmatmul.mubr.f32.gmra.mrb[0].mxu0 %v28
    %v179 = vpop.f32.mrb[0].mxu0
    %v180 = vadd.f32 0.0, %v179
    %v181 = vpop.f32.mrb[0].mxu0
    %182 = vmatprep.mubr.f32.mxu0 %v31
    %183 = vmatmul.mubr.f32.gmra.mrb[0].mxu0 %v30
    %v184 = vpop.f32.mrb[0].mxu0
    %v185 = vadd.f32 0.0, %v184
    %v186 = vpop.f32.mrb[0].mxu0
    %187 = vmatprep.mubr.f32.mxu0 %v33
    %188 = vmatmul.mubr.f32.gmra.mrb[0].mxu0 %v32
    %v189 = vpop.f32.mrb[0].mxu0
    %v190 = vadd.f32 0.0, %v189
    %v191 = vpop.f32.mrb[0].mxu0
    %192 = vmatprep.mubr.f32.mxu0 %v35
    %193 = vmatmul.mubr.f32.gmra.mrb[0].mxu0 %v34
    %v194 = vpop.f32.mrb[0].mxu0
    %v195 = vadd.f32 0.0, %v194
    %v196 = vpop.f32.mrb[0].mxu0
    %197 = vmatprep.mubr.f32.mxu0 %v37
    %198 = vmatmul.mubr.f32.gmra.mrb[0].mxu0 %v36
    %v199 = vpop.f32.mrb[0].mxu0
    %v200 = vadd.f32 0.0, %v199
    %v201 = vpop.f32.mrb[0].mxu0
    %202 = vmatprep.mubr.f32.mxu0 %v39
    %203 = vmatmul.mubr.f32.gmra.mrb[0].mxu0 %v38
    %v204 = vpop.f32.mrb[0].mxu0
    %v205 = vadd.f32 0.0, %v204
    %v206 = vpop.f32.mrb[0].mxu0
    %207 = vmatprep.mubr.f32.mxu0 %v41
    %208 = vmatmul.mubr.f32.gmra.mrb[0].mxu0 %v40
    %v209 = vpop.f32.mrb[0].mxu0
    %v210 = vadd.f32 0.0, %v209
    %v211 = vpop.f32.mrb[0].mxu0
    %212 = vmatprep.mubr.f32.mxu0 %v43
    %213 = vmatmul.mubr.f32.gmra.mrb[0].mxu0 %v42
    %v214 = vpop.f32.mrb[0].mxu0
    %v215 = vadd.f32 0.0, %v214
    %v216 = vpop.f32.mrb[0].mxu0
    %217 = vmatprep.mubr.f32.mxu0 %v45
    %218 = vmatmul.mubr.f32.gmra.mrb[0].mxu0 %v44
    %v219 = vpop.f32.mrb[0].mxu0
    %v220 = vadd.f32 0.0, %v219
    %v221 = vpop.f32.mrb[0].mxu0
    %222 = vdwg.mxu0
    %p223 = scmp.eq.s32.totalorder 0, 0
    // Predicated region
    $region10: #{association_matrix.1} parent=1 // pred_check
      %p224 = pneg %p223
    $region11: #{association_matrix.1} parent=1 // pred_check_branch
      %226 = sbr.rel (%p224) target = $region13
    $region12: #{association_matrix.1} parent=1 // pred_region
      %227 = vst [vmem:[#allocation2] sm:$0xff] %v145
      %228 = vst [vmem:[#allocation2 + $0x8] sm:$0xff] %v150
      %229 = vst [vmem:[#allocation2 + $0x10] sm:$0xff] %v155
      %230 = vst [vmem:[#allocation2 + $0x18] sm:$0xff] %v160
      %231 = vst [vmem:[#allocation2 + $0x20] sm:$0xff] %v165
      %232 = vst [vmem:[#allocation2 + $0x28] sm:$0xff] %v170
      %233 = vst [vmem:[#allocation2 + $0x30] sm:$0xff] %v175
      %234 = vst [vmem:[#allocation2 + $0x38] sm:$0xff] %v180
      %235 = vst [vmem:[#allocation2 + $0x40] sm:$0xff] %v185
      %236 = vst [vmem:[#allocation2 + $0x48] sm:$0xff] %v190
      %237 = vst [vmem:[#allocation2 + $0x50] sm:$0xff] %v195
      %238 = vst [vmem:[#allocation2 + $0x58] sm:$0xff] %v200
      %239 = vst [vmem:[#allocation2 + $0x60] sm:$0xff] %v205
      %240 = vst [vmem:[#allocation2 + $0x68] sm:$0xff] %v210
      %241 = vst [vmem:[#allocation2 + $0x70] sm:$0xff] %v215
      %242 = vst [vmem:[#allocation2 + $0x78] sm:$0xff] %v220
    $region13: #{association_matrix.1} parent=1 // pred_fallthru
      _
    %p243 = scmp.gt.s32.totalorder 0, 0
    // Predicated region
    $region14: #{association_matrix.1} parent=1 // pred_check
      %p244 = pneg %p243
    $region15: #{association_matrix.1} parent=1 // pred_check_branch
      %246 = sbr.rel (%p244) target = $region17
    $region16: #{association_matrix.1} parent=1 // pred_region
      %v247 = vld [vmem:[#allocation2] sm:$0xff]
      %v248 = vld [vmem:[#allocation2 + $0x8] sm:$0xff]
      %v249 = vld [vmem:[#allocation2 + $0x10] sm:$0xff]
      %v250 = vld [vmem:[#allocation2 + $0x18] sm:$0xff]
      %v251 = vld [vmem:[#allocation2 + $0x20] sm:$0xff]
      %v252 = vld [vmem:[#allocation2 + $0x28] sm:$0xff]
      %v253 = vld [vmem:[#allocation2 + $0x30] sm:$0xff]
      %v254 = vld [vmem:[#allocation2 + $0x38] sm:$0xff]
      %v255 = vld [vmem:[#allocation2 + $0x40] sm:$0xff]
      %v256 = vld [vmem:[#allocation2 + $0x48] sm:$0xff]
      %v257 = vld [vmem:[#allocation2 + $0x50] sm:$0xff]
      %v258 = vld [vmem:[#allocation2 + $0x58] sm:$0xff]
      %v259 = vld [vmem:[#allocation2 + $0x60] sm:$0xff]
      %v260 = vld [vmem:[#allocation2 + $0x68] sm:$0xff]
      %v261 = vld [vmem:[#allocation2 + $0x70] sm:$0xff]
      %v262 = vld [vmem:[#allocation2 + $0x78] sm:$0xff]
      %v263 = vadd.f32 %v247, %v145
      %v264 = vadd.f32 %v248, %v150
      %v265 = vadd.f32 %v249, %v155
      %v266 = vadd.f32 %v250, %v160
      %v267 = vadd.f32 %v251, %v165
      %v268 = vadd.f32 %v252, %v170
      %v269 = vadd.f32 %v253, %v175
      %v270 = vadd.f32 %v254, %v180
      %v271 = vadd.f32 %v255, %v185
      %v272 = vadd.f32 %v256, %v190
      %v273 = vadd.f32 %v257, %v195
      %v274 = vadd.f32 %v258, %v200
      %v275 = vadd.f32 %v259, %v205
      %v276 = vadd.f32 %v260, %v210
      %v277 = vadd.f32 %v261, %v215
      %v278 = vadd.f32 %v262, %v220
      %279 = vst [vmem:[#allocation2] sm:$0xff] %v263
      %280 = vst [vmem:[#allocation2 + $0x8] sm:$0xff] %v264
      %281 = vst [vmem:[#allocation2 + $0x10] sm:$0xff] %v265
      %282 = vst [vmem:[#allocation2 + $0x18] sm:$0xff] %v266
      %283 = vst [vmem:[#allocation2 + $0x20] sm:$0xff] %v267
      %284 = vst [vmem:[#allocation2 + $0x28] sm:$0xff] %v268
      %285 = vst [vmem:[#allocation2 + $0x30] sm:$0xff] %v269
      %286 = vst [vmem:[#allocation2 + $0x38] sm:$0xff] %v270
      %287 = vst [vmem:[#allocation2 + $0x40] sm:$0xff] %v271
      %288 = vst [vmem:[#allocation2 + $0x48] sm:$0xff] %v272
      %289 = vst [vmem:[#allocation2 + $0x50] sm:$0xff] %v273
      %290 = vst [vmem:[#allocation2 + $0x58] sm:$0xff] %v274
      %291 = vst [vmem:[#allocation2 + $0x60] sm:$0xff] %v275
      %292 = vst [vmem:[#allocation2 + $0x68] sm:$0xff] %v276
      %293 = vst [vmem:[#allocation2 + $0x70] sm:$0xff] %v277
      %294 = vst [vmem:[#allocation2 + $0x78] sm:$0xff] %v278
    $region17: #{association_matrix.1} parent=1 // pred_fallthru
      _
    // Predicated region
    $region18: #{association_matrix.1} parent=1 // pred_check
      %p295 = pneg %p223
    $region19: #{association_matrix.1} parent=1 // pred_check_branch
      %297 = sbr.rel (%p295) target = $region21
    $region20: #{association_matrix.1} parent=1 // pred_region
      %v298 = vld [vmem:[#allocation2] sm:$0xff]
      %v299 = vld [vmem:[#allocation2 + $0x8] sm:$0xff]
      %v300 = vld [vmem:[#allocation2 + $0x10] sm:$0xff]
      %v301 = vld [vmem:[#allocation2 + $0x18] sm:$0xff]
      %v302 = vld [vmem:[#allocation2 + $0x20] sm:$0xff]
      %v303 = vld [vmem:[#allocation2 + $0x28] sm:$0xff]
      %v304 = vld [vmem:[#allocation2 + $0x30] sm:$0xff]
      %v305 = vld [vmem:[#allocation2 + $0x38] sm:$0xff]
      %v306 = vld [vmem:[#allocation2 + $0x40] sm:$0xff]
      %v307 = vld [vmem:[#allocation2 + $0x48] sm:$0xff]
      %v308 = vld [vmem:[#allocation2 + $0x50] sm:$0xff]
      %v309 = vld [vmem:[#allocation2 + $0x58] sm:$0xff]
      %v310 = vld [vmem:[#allocation2 + $0x60] sm:$0xff]
      %v311 = vld [vmem:[#allocation2 + $0x68] sm:$0xff]
      %v312 = vld [vmem:[#allocation2 + $0x70] sm:$0xff]
      %v313 = vld [vmem:[#allocation2 + $0x78] sm:$0xff]
      %v314 = vlaneseq
      %v315 = vand.u32 %v314, 127
      %vm316 = vcmp.lt.s32.totalorder %v315, 16
      %v317 = vlaneseq
      %v318 = vshrl.u32 %v317, 7
      %v319 = vadd.s32 %v318, 8
      %v320 = vadd.s32 %v318, 16
      %v321 = vadd.s32 %v318, 24
      %v322 = vadd.s32 %v318, 32
      %v323 = vadd.s32 %v318, 40
      %v324 = vadd.s32 %v318, 48
      %v325 = vadd.s32 %v318, 56
      %v326 = vadd.s32 %v318, 64
      %v327 = vadd.s32 %v318, 72
      %v328 = vadd.s32 %v318, 80
      %v329 = vadd.s32 %v318, 88
      %v330 = vadd.s32 %v318, 96
      %v331 = vadd.s32 %v318, 104
      %v332 = vadd.s32 %v318, 112
      %v333 = vadd.s32 %v318, 120
      %vm334 = vcmp.lt.s32.totalorder %v318, 8
      %vm335 = vcmp.lt.s32.totalorder %v319, 8
      %vm336 = vcmp.lt.s32.totalorder %v320, 8
      %vm337 = vcmp.lt.s32.totalorder %v321, 8
      %vm338 = vcmp.lt.s32.totalorder %v322, 8
      %vm339 = vcmp.lt.s32.totalorder %v323, 8
      %vm340 = vcmp.lt.s32.totalorder %v324, 8
      %vm341 = vcmp.lt.s32.totalorder %v325, 8
      %vm342 = vcmp.lt.s32.totalorder %v326, 8
      %vm343 = vcmp.lt.s32.totalorder %v327, 8
      %vm344 = vcmp.lt.s32.totalorder %v328, 8
      %vm345 = vcmp.lt.s32.totalorder %v329, 8
      %vm346 = vcmp.lt.s32.totalorder %v330, 8
      %vm347 = vcmp.lt.s32.totalorder %v331, 8
      %vm348 = vcmp.lt.s32.totalorder %v332, 8
      %vm349 = vcmp.lt.s32.totalorder %v333, 8
      %v350 = vsel %vm316, 1, 0
      %vm351 = vcmp.eq.s32.totalorder %v350, 1
      %v352 = vsel %vm351, %v298, -inf
      %v353 = vsel %vm351, %v299, -inf
      %v354 = vsel %vm351, %v300, -inf
      %v355 = vsel %vm351, %v301, -inf
      %v356 = vsel %vm351, %v302, -inf
      %v357 = vsel %vm351, %v303, -inf
      %v358 = vsel %vm351, %v304, -inf
      %v359 = vsel %vm351, %v305, -inf
      %v360 = vsel %vm351, %v306, -inf
      %v361 = vsel %vm351, %v307, -inf
      %v362 = vsel %vm351, %v308, -inf
      %v363 = vsel %vm351, %v309, -inf
      %v364 = vsel %vm351, %v310, -inf
      %v365 = vsel %vm351, %v311, -inf
      %v366 = vsel %vm351, %v312, -inf
      %v367 = vsel %vm351, %v313, -inf
      %368 = vmax.xlane.f32.xlu0 %v352
      %v369 = vpop.xlane.xlu0 %368
      %370 = vmax.xlane.f32.xlu0 %v353
      %v371 = vpop.xlane.xlu0 %370
      %372 = vmax.xlane.f32.xlu0 %v354
      %v373 = vpop.xlane.xlu0 %372
      %374 = vmax.xlane.f32.xlu0 %v355
      %v375 = vpop.xlane.xlu0 %374
      %376 = vmax.xlane.f32.xlu0 %v356
      %v377 = vpop.xlane.xlu0 %376
      %378 = vmax.xlane.f32.xlu0 %v357
      %v379 = vpop.xlane.xlu0 %378
      %380 = vmax.xlane.f32.xlu0 %v358
      %v381 = vpop.xlane.xlu0 %380
      %382 = vmax.xlane.f32.xlu0 %v359
      %v383 = vpop.xlane.xlu0 %382
      %384 = vmax.xlane.f32.xlu0 %v360
      %v385 = vpop.xlane.xlu0 %384
      %386 = vmax.xlane.f32.xlu0 %v361
      %v387 = vpop.xlane.xlu0 %386
      %388 = vmax.xlane.f32.xlu0 %v362
      %v389 = vpop.xlane.xlu0 %388
      %390 = vmax.xlane.f32.xlu0 %v363
      %v391 = vpop.xlane.xlu0 %390
      %392 = vmax.xlane.f32.xlu0 %v364
      %v393 = vpop.xlane.xlu0 %392
      %394 = vmax.xlane.f32.xlu0 %v365
      %v395 = vpop.xlane.xlu0 %394
      %396 = vmax.xlane.f32.xlu0 %v366
      %v397 = vpop.xlane.xlu0 %396
      %398 = vmax.xlane.f32.xlu0 %v367
      %v399 = vpop.xlane.xlu0 %398
      %v400 = vsub.f32 %v352, %v369
      %v401 = vsub.f32 %v353, %v371
      %v402 = vsub.f32 %v354, %v373
      %v403 = vsub.f32 %v355, %v375
      %v404 = vsub.f32 %v356, %v377
      %v405 = vsub.f32 %v357, %v379
      %v406 = vsub.f32 %v358, %v381
      %v407 = vsub.f32 %v359, %v383
      %v408 = vsub.f32 %v360, %v385
      %v409 = vsub.f32 %v361, %v387
      %v410 = vsub.f32 %v362, %v389
      %v411 = vsub.f32 %v363, %v391
      %v412 = vsub.f32 %v364, %v393
      %v413 = vsub.f32 %v365, %v395
      %v414 = vsub.f32 %v366, %v397
      %v415 = vsub.f32 %v367, %v399
      %v416 = vmul.f32 %v400, 1.442695
      %v417 = vpow.pop %v416
      %v418 = vmul.f32 %v401, 1.442695
      %v419 = vpow.pop %v418
      %v420 = vmul.f32 %v402, 1.442695
      %v421 = vpow.pop %v420
      %v422 = vmul.f32 %v403, 1.442695
      %v423 = vpow.pop %v422
      %v424 = vmul.f32 %v404, 1.442695
      %v425 = vpow.pop %v424
      %v426 = vmul.f32 %v405, 1.442695
      %v427 = vpow.pop %v426
      %v428 = vmul.f32 %v406, 1.442695
      %v429 = vpow.pop %v428
      %v430 = vmul.f32 %v407, 1.442695
      %v431 = vpow.pop %v430
      %v432 = vmul.f32 %v408, 1.442695
      %v433 = vpow.pop %v432
      %v434 = vmul.f32 %v409, 1.442695
      %v435 = vpow.pop %v434
      %v436 = vmul.f32 %v410, 1.442695
      %v437 = vpow.pop %v436
      %v438 = vmul.f32 %v411, 1.442695
      %v439 = vpow.pop %v438
      %v440 = vmul.f32 %v412, 1.442695
      %v441 = vpow.pop %v440
      %v442 = vmul.f32 %v413, 1.442695
      %v443 = vpow.pop %v442
      %v444 = vmul.f32 %v414, 1.442695
      %v445 = vpow.pop %v444
      %v446 = vmul.f32 %v415, 1.442695
      %v447 = vpow.pop %v446
      %448 = vadd.xlane.f32.xlu0 %v417
      %v449 = vpop.xlane.xlu0 %448
      %450 = vadd.xlane.f32.xlu0 %v419
      %v451 = vpop.xlane.xlu0 %450
      %452 = vadd.xlane.f32.xlu0 %v421
      %v453 = vpop.xlane.xlu0 %452
      %454 = vadd.xlane.f32.xlu0 %v423
      %v455 = vpop.xlane.xlu0 %454
      %456 = vadd.xlane.f32.xlu0 %v425
      %v457 = vpop.xlane.xlu0 %456
      %458 = vadd.xlane.f32.xlu0 %v427
      %v459 = vpop.xlane.xlu0 %458
      %460 = vadd.xlane.f32.xlu0 %v429
      %v461 = vpop.xlane.xlu0 %460
      %462 = vadd.xlane.f32.xlu0 %v431
      %v463 = vpop.xlane.xlu0 %462
      %464 = vadd.xlane.f32.xlu0 %v433
      %v465 = vpop.xlane.xlu0 %464
      %466 = vadd.xlane.f32.xlu0 %v435
      %v467 = vpop.xlane.xlu0 %466
      %468 = vadd.xlane.f32.xlu0 %v437
      %v469 = vpop.xlane.xlu0 %468
      %470 = vadd.xlane.f32.xlu0 %v439
      %v471 = vpop.xlane.xlu0 %470
      %472 = vadd.xlane.f32.xlu0 %v441
      %v473 = vpop.xlane.xlu0 %472
      %474 = vadd.xlane.f32.xlu0 %v443
      %v475 = vpop.xlane.xlu0 %474
      %476 = vadd.xlane.f32.xlu0 %v445
      %v477 = vpop.xlane.xlu0 %476
      %478 = vadd.xlane.f32.xlu0 %v447
      %v479 = vpop.xlane.xlu0 %478
      %v480 = vrcp.pop %v449
      %v481 = vmul.f32 %v417, %v480
      %v482 = vrcp.pop %v451
      %v483 = vmul.f32 %v419, %v482
      %v484 = vrcp.pop %v453
      %v485 = vmul.f32 %v421, %v484
      %v486 = vrcp.pop %v455
      %v487 = vmul.f32 %v423, %v486
      %v488 = vrcp.pop %v457
      %v489 = vmul.f32 %v425, %v488
      %v490 = vrcp.pop %v459
      %v491 = vmul.f32 %v427, %v490
      %v492 = vrcp.pop %v461
      %v493 = vmul.f32 %v429, %v492
      %v494 = vrcp.pop %v463
      %v495 = vmul.f32 %v431, %v494
      %v496 = vrcp.pop %v465
      %v497 = vmul.f32 %v433, %v496
      %v498 = vrcp.pop %v467
      %v499 = vmul.f32 %v435, %v498
      %v500 = vrcp.pop %v469
      %v501 = vmul.f32 %v437, %v500
      %v502 = vrcp.pop %v471
      %v503 = vmul.f32 %v439, %v502
      %v504 = vrcp.pop %v473
      %v505 = vmul.f32 %v441, %v504
      %v506 = vrcp.pop %v475
      %v507 = vmul.f32 %v443, %v506
      %v508 = vrcp.pop %v477
      %v509 = vmul.f32 %v445, %v508
      %v510 = vrcp.pop %v479
      %v511 = vmul.f32 %v447, %v510
      %v512 = vsel %vm334, 1, 0
      %v513 = vsel %vm335, 1, 0
      %v514 = vsel %vm336, 1, 0
      %v515 = vsel %vm337, 1, 0
      %v516 = vsel %vm338, 1, 0
      %v517 = vsel %vm339, 1, 0
      %v518 = vsel %vm340, 1, 0
      %v519 = vsel %vm341, 1, 0
      %v520 = vsel %vm342, 1, 0
      %v521 = vsel %vm343, 1, 0
      %v522 = vsel %vm344, 1, 0
      %v523 = vsel %vm345, 1, 0
      %v524 = vsel %vm346, 1, 0
      %v525 = vsel %vm347, 1, 0
      %v526 = vsel %vm348, 1, 0
      %v527 = vsel %vm349, 1, 0
      %vm528 = vcmp.eq.s32.totalorder %v512, 1
      %vm529 = vcmp.eq.s32.totalorder %v513, 1
      %vm530 = vcmp.eq.s32.totalorder %v514, 1
      %vm531 = vcmp.eq.s32.totalorder %v515, 1
      %vm532 = vcmp.eq.s32.totalorder %v516, 1
      %vm533 = vcmp.eq.s32.totalorder %v517, 1
      %vm534 = vcmp.eq.s32.totalorder %v518, 1
      %vm535 = vcmp.eq.s32.totalorder %v519, 1
      %vm536 = vcmp.eq.s32.totalorder %v520, 1
      %vm537 = vcmp.eq.s32.totalorder %v521, 1
      %vm538 = vcmp.eq.s32.totalorder %v522, 1
      %vm539 = vcmp.eq.s32.totalorder %v523, 1
      %vm540 = vcmp.eq.s32.totalorder %v524, 1
      %vm541 = vcmp.eq.s32.totalorder %v525, 1
      %vm542 = vcmp.eq.s32.totalorder %v526, 1
      %vm543 = vcmp.eq.s32.totalorder %v527, 1
      %v544 = vsel %vm528, %v298, -inf
      %v545 = vsel %vm529, %v299, -inf
      %v546 = vsel %vm530, %v300, -inf
      %v547 = vsel %vm531, %v301, -inf
      %v548 = vsel %vm532, %v302, -inf
      %v549 = vsel %vm533, %v303, -inf
      %v550 = vsel %vm534, %v304, -inf
      %v551 = vsel %vm535, %v305, -inf
      %v552 = vsel %vm536, %v306, -inf
      %v553 = vsel %vm537, %v307, -inf
      %v554 = vsel %vm538, %v308, -inf
      %v555 = vsel %vm539, %v309, -inf
      %v556 = vsel %vm540, %v310, -inf
      %v557 = vsel %vm541, %v311, -inf
      %v558 = vsel %vm542, %v312, -inf
      %v559 = vsel %vm543, %v313, -inf
      %v560 = vmax.f32 %v544, %v548
      %v561 = vmax.f32 %v545, %v549
      %v562 = vmax.f32 %v546, %v550
      %v563 = vmax.f32 %v547, %v551
      %v564 = vmax.f32 %v560, %v552
      %v565 = vmax.f32 %v561, %v553
      %v566 = vmax.f32 %v562, %v554
      %v567 = vmax.f32 %v563, %v555
      %v568 = vmax.f32 %v564, %v556
      %v569 = vmax.f32 %v565, %v557
      %v570 = vmax.f32 %v566, %v558
      %v571 = vmax.f32 %v567, %v559
      %v572 = vmax.f32 %v568, %v569
      %v573 = vmax.f32 %v570, %v571
      %v574 = vmax.f32 %v572, %v573
      %v575 = vrot.slane %v574, 4
      %v576 = vmax.f32 %v574, %v575
      %v577 = vrot.slane %v576, 2
      %v578 = vmax.f32 %v576, %v577
      %v579 = vrot.slane %v578, 1
      %v580 = vmax.f32 %v578, %v579
      %v581 = vsub.f32 %v544, %v580
      %v582 = vsub.f32 %v545, %v580
      %v583 = vsub.f32 %v546, %v580
      %v584 = vsub.f32 %v547, %v580
      %v585 = vsub.f32 %v548, %v580
      %v586 = vsub.f32 %v549, %v580
      %v587 = vsub.f32 %v550, %v580
      %v588 = vsub.f32 %v551, %v580
      %v589 = vsub.f32 %v552, %v580
      %v590 = vsub.f32 %v553, %v580
      %v591 = vsub.f32 %v554, %v580
      %v592 = vsub.f32 %v555, %v580
      %v593 = vsub.f32 %v556, %v580
      %v594 = vsub.f32 %v557, %v580
      %v595 = vsub.f32 %v558, %v580
      %v596 = vsub.f32 %v559, %v580
      %v597 = vmul.f32 %v581, 1.442695
      %v598 = vpow.pop %v597
      %v599 = vmul.f32 %v582, 1.442695
      %v600 = vpow.pop %v599
      %v601 = vmul.f32 %v583, 1.442695
      %v602 = vpow.pop %v601
      %v603 = vmul.f32 %v584, 1.442695
      %v604 = vpow.pop %v603
      %v605 = vmul.f32 %v585, 1.442695
      %v606 = vpow.pop %v605
      %v607 = vmul.f32 %v586, 1.442695
      %v608 = vpow.pop %v607
      %v609 = vmul.f32 %v587, 1.442695
      %v610 = vpow.pop %v609
      %v611 = vmul.f32 %v588, 1.442695
      %v612 = vpow.pop %v611
      %v613 = vmul.f32 %v589, 1.442695
      %v614 = vpow.pop %v613
      %v615 = vmul.f32 %v590, 1.442695
      %v616 = vpow.pop %v615
      %v617 = vmul.f32 %v591, 1.442695
      %v618 = vpow.pop %v617
      %v619 = vmul.f32 %v592, 1.442695
      %v620 = vpow.pop %v619
      %v621 = vmul.f32 %v593, 1.442695
      %v622 = vpow.pop %v621
      %v623 = vmul.f32 %v594, 1.442695
      %v624 = vpow.pop %v623
      %v625 = vmul.f32 %v595, 1.442695
      %v626 = vpow.pop %v625
      %v627 = vmul.f32 %v596, 1.442695
      %v628 = vpow.pop %v627
      %v629 = vadd.f32 %v598, %v600
      %v630 = vadd.f32 %v629, %v602
      %v631 = vadd.f32 %v630, %v604
      %v632 = vadd.f32 %v631, %v606
      %v633 = vadd.f32 %v632, %v608
      %v634 = vadd.f32 %v633, %v610
      %v635 = vadd.f32 %v634, %v612
      %v636 = vadd.f32 %v635, %v614
      %v637 = vadd.f32 %v636, %v616
      %v638 = vadd.f32 %v637, %v618
      %v639 = vadd.f32 %v638, %v620
      %v640 = vadd.f32 %v639, %v622
      %v641 = vadd.f32 %v640, %v624
      %v642 = vadd.f32 %v641, %v626
      %v643 = vadd.f32 %v642, %v628
      %v644 = vrot.slane %v643, 4
      %v645 = vadd.f32 %v643, %v644
      %v646 = vrot.slane %v645, 2
      %v647 = vadd.f32 %v645, %v646
      %v648 = vrot.slane %v647, 1
      %v649 = vadd.f32 %v647, %v648
      %v650 = vrcp.pop %v649
      %v651 = vmul.f32 %v598, %v650
      %v652 = vmul.f32 %v600, %v650
      %v653 = vmul.f32 %v602, %v650
      %v654 = vmul.f32 %v604, %v650
      %v655 = vmul.f32 %v606, %v650
      %v656 = vmul.f32 %v608, %v650
      %v657 = vmul.f32 %v610, %v650
      %v658 = vmul.f32 %v612, %v650
      %v659 = vmul.f32 %v614, %v650
      %v660 = vmul.f32 %v616, %v650
      %v661 = vmul.f32 %v618, %v650
      %v662 = vmul.f32 %v620, %v650
      %v663 = vmul.f32 %v622, %v650
      %v664 = vmul.f32 %v624, %v650
      %v665 = vmul.f32 %v626, %v650
      %v666 = vmul.f32 %v628, %v650
      %667 = vmatprep.subr.mxu0 0.0
      %668 = vmatpush1.xpose.msra.mxu0 %v651
      %669 = vmatprep.subr.mxu0 0.0
      %670 = vmatpush1.xpose.msra.mxu0 %v652
      %671 = vmatprep.subr.mxu0 0.0
      %672 = vmatpush1.xpose.msra.mxu0 %v653
      %673 = vmatprep.subr.mxu0 0.0
      %674 = vmatpush1.xpose.msra.mxu0 %v654
      %675 = vmatprep.subr.mxu0 0.0
      %676 = vmatpush1.xpose.msra.mxu0 %v655
      %677 = vmatprep.subr.mxu0 0.0
      %678 = vmatpush1.xpose.msra.mxu0 %v656
      %679 = vmatprep.subr.mxu0 0.0
      %680 = vmatpush1.xpose.msra.mxu0 %v657
      %681 = vmatprep.subr.mxu0 0.0
      %682 = vmatpush1.xpose.msra.mxu0 %v658
      %683 = vmatprep.subr.mxu0 0.0
      %684 = vmatpush1.xpose.msra.mxu0 %v659
      %685 = vmatprep.subr.mxu0 0.0
      %686 = vmatpush1.xpose.msra.mxu0 %v660
      %687 = vmatprep.subr.mxu0 0.0
      %688 = vmatpush1.xpose.msra.mxu0 %v661
      %689 = vmatprep.subr.mxu0 0.0
      %690 = vmatpush1.xpose.msra.mxu0 %v662
      %691 = vmatprep.subr.mxu0 0.0
      %692 = vmatpush1.xpose.msra.mxu0 %v663
      %693 = vmatprep.subr.mxu0 0.0
      %694 = vmatpush1.xpose.msra.mxu0 %v664
      %695 = vmatprep.subr.mxu0 0.0
      %696 = vmatpush1.xpose.msra.mxu0 %v665
      %697 = vmatprep.subr.mxu0 0.0
      %698 = vmatpush1.xpose.msra.mxu0 %v666
      %699 = vmatprep.subr.mxu0 0.0
      %700 = vmatpush1.xpose.msra.mxu0 0.0
      %701 = vmatprep.subr.mxu0 0.0
      %702 = vmatpush1.xpose.msra.mxu0 0.0
      %703 = vmatprep.subr.mxu0 0.0
      %704 = vmatpush1.xpose.msra.mxu0 0.0
      %705 = vmatprep.subr.mxu0 0.0
      %706 = vmatpush1.xpose.msra.mxu0 0.0
      %707 = vmatprep.subr.mxu0 0.0
      %708 = vmatpush1.xpose.msra.mxu0 0.0
      %709 = vmatprep.subr.mxu0 0.0
      %710 = vmatpush1.xpose.msra.mxu0 0.0
      %711 = vmatprep.subr.mxu0 0.0
      %712 = vmatpush1.xpose.msra.mxu0 0.0
      %713 = vmatprep.subr.mxu0 0.0
      %714 = vmatpush1.xpose.msra.mxu0 0.0
      %715 = vmatprep.subr.mxu0 0.0
      %716 = vmatpush1.xpose.msra.mxu0 0.0
      %717 = vmatprep.subr.mxu0 0.0
      %718 = vmatpush1.xpose.msra.mxu0 0.0
      %719 = vmatprep.subr.mxu0 0.0
      %720 = vmatpush1.xpose.msra.mxu0 0.0
      %721 = vmatprep.subr.mxu0 0.0
      %722 = vmatpush1.xpose.msra.mxu0 0.0
      %723 = vmatprep.subr.mxu0 0.0
      %724 = vmatpush1.xpose.msra.mxu0 0.0
      %725 = vmatprep.subr.mxu0 0.0
      %726 = vmatpush1.xpose.msra.mxu0 0.0
      %727 = vmatprep.subr.mxu0 0.0
      %728 = vmatpush1.xpose.msra.mxu0 0.0
      %729 = vmatprep.subr.mxu0 0.0
      %730 = vmatpush1.xpose.msra.mxu0 0.0
      %731 = vmatprep.mubr.f32.mxu0 0.0
      %732 = vmatmul.mubr.f32.gmra.mrb[0].mxu0 %v481
      %v733 = vpop.f32.mrb[0].mxu0
      %v734 = vadd.f32 0.0, %v733
      %v735 = vpop.f32.mrb[0].mxu0
      %736 = vmatprep.mubr.f32.mxu0 0.0
      %737 = vmatmul.mubr.f32.gmra.mrb[0].mxu0 %v483
      %v738 = vpop.f32.mrb[0].mxu0
      %v739 = vadd.f32 0.0, %v738
      %v740 = vpop.f32.mrb[0].mxu0
      %741 = vmatprep.mubr.f32.mxu0 0.0
      %742 = vmatmul.mubr.f32.gmra.mrb[0].mxu0 %v485
      %v743 = vpop.f32.mrb[0].mxu0
      %v744 = vadd.f32 0.0, %v743
      %v745 = vpop.f32.mrb[0].mxu0
      %746 = vmatprep.mubr.f32.mxu0 0.0
      %747 = vmatmul.mubr.f32.gmra.mrb[0].mxu0 %v487
      %v748 = vpop.f32.mrb[0].mxu0
      %v749 = vadd.f32 0.0, %v748
      %v750 = vpop.f32.mrb[0].mxu0
      %751 = vmatprep.mubr.f32.mxu0 0.0
      %752 = vmatmul.mubr.f32.gmra.mrb[0].mxu0 %v489
      %v753 = vpop.f32.mrb[0].mxu0
      %v754 = vadd.f32 0.0, %v753
      %v755 = vpop.f32.mrb[0].mxu0
      %756 = vmatprep.mubr.f32.mxu0 0.0
      %757 = vmatmul.mubr.f32.gmra.mrb[0].mxu0 %v491
      %v758 = vpop.f32.mrb[0].mxu0
      %v759 = vadd.f32 0.0, %v758
      %v760 = vpop.f32.mrb[0].mxu0
      %761 = vmatprep.mubr.f32.mxu0 0.0
      %762 = vmatmul.mubr.f32.gmra.mrb[0].mxu0 %v493
      %v763 = vpop.f32.mrb[0].mxu0
      %v764 = vadd.f32 0.0, %v763
      %v765 = vpop.f32.mrb[0].mxu0
      %766 = vmatprep.mubr.f32.mxu0 0.0
      %767 = vmatmul.mubr.f32.gmra.mrb[0].mxu0 %v495
      %v768 = vpop.f32.mrb[0].mxu0
      %v769 = vadd.f32 0.0, %v768
      %v770 = vpop.f32.mrb[0].mxu0
      %771 = vmatprep.mubr.f32.mxu0 0.0
      %772 = vmatmul.mubr.f32.gmra.mrb[0].mxu0 %v497
      %v773 = vpop.f32.mrb[0].mxu0
      %v774 = vadd.f32 0.0, %v773
      %v775 = vpop.f32.mrb[0].mxu0
      %776 = vmatprep.mubr.f32.mxu0 0.0
      %777 = vmatmul.mubr.f32.gmra.mrb[0].mxu0 %v499
      %v778 = vpop.f32.mrb[0].mxu0
      %v779 = vadd.f32 0.0, %v778
      %v780 = vpop.f32.mrb[0].mxu0
      %781 = vmatprep.mubr.f32.mxu0 0.0
      %782 = vmatmul.mubr.f32.gmra.mrb[0].mxu0 %v501
      %v783 = vpop.f32.mrb[0].mxu0
      %v784 = vadd.f32 0.0, %v783
      %v785 = vpop.f32.mrb[0].mxu0
      %786 = vmatprep.mubr.f32.mxu0 0.0
      %787 = vmatmul.mubr.f32.gmra.mrb[0].mxu0 %v503
      %v788 = vpop.f32.mrb[0].mxu0
      %v789 = vadd.f32 0.0, %v788
      %v790 = vpop.f32.mrb[0].mxu0
      %791 = vmatprep.mubr.f32.mxu0 0.0
      %792 = vmatmul.mubr.f32.gmra.mrb[0].mxu0 %v505
      %v793 = vpop.f32.mrb[0].mxu0
      %v794 = vadd.f32 0.0, %v793
      %v795 = vpop.f32.mrb[0].mxu0
      %796 = vmatprep.mubr.f32.mxu0 0.0
      %797 = vmatmul.mubr.f32.gmra.mrb[0].mxu0 %v507
      %v798 = vpop.f32.mrb[0].mxu0
      %v799 = vadd.f32 0.0, %v798
      %v800 = vpop.f32.mrb[0].mxu0
      %801 = vmatprep.mubr.f32.mxu0 0.0
      %802 = vmatmul.mubr.f32.gmra.mrb[0].mxu0 %v509
      %v803 = vpop.f32.mrb[0].mxu0
      %v804 = vadd.f32 0.0, %v803
      %v805 = vpop.f32.mrb[0].mxu0
      %806 = vmatprep.mubr.f32.mxu0 0.0
      %807 = vmatmul.mubr.f32.gmra.mrb[0].mxu0 %v511
      %v808 = vpop.f32.mrb[0].mxu0
      %v809 = vadd.f32 0.0, %v808
      %v810 = vpop.f32.mrb[0].mxu0
      %811 = vdwg.mxu0
      %812 = vst [vmem:[%s2] sm:$0xff] %v734
      %813 = vst [vmem:[%s2 + $0x8] sm:$0xff] %v739
      %814 = vst [vmem:[%s2 + $0x10] sm:$0xff] %v744
      %815 = vst [vmem:[%s2 + $0x18] sm:$0xff] %v749
      %816 = vst [vmem:[%s2 + $0x20] sm:$0xff] %v754
      %817 = vst [vmem:[%s2 + $0x28] sm:$0xff] %v759
      %818 = vst [vmem:[%s2 + $0x30] sm:$0xff] %v764
      %819 = vst [vmem:[%s2 + $0x38] sm:$0xff] %v769
      %820 = vst [vmem:[%s2 + $0x40] sm:$0xff] %v774
      %821 = vst [vmem:[%s2 + $0x48] sm:$0xff] %v779
      %822 = vst [vmem:[%s2 + $0x50] sm:$0xff] %v784
      %823 = vst [vmem:[%s2 + $0x58] sm:$0xff] %v789
      %824 = vst [vmem:[%s2 + $0x60] sm:$0xff] %v794
      %825 = vst [vmem:[%s2 + $0x68] sm:$0xff] %v799
      %826 = vst [vmem:[%s2 + $0x70] sm:$0xff] %v804
      %827 = vst [vmem:[%s2 + $0x78] sm:$0xff] %v809
      %v828 = vsel %vm528, %v481, 0.0
      %v829 = vsel %vm529, %v483, 0.0
      %v830 = vsel %vm530, %v485, 0.0
      %v831 = vsel %vm531, %v487, 0.0
      %v832 = vsel %vm532, %v489, 0.0
      %v833 = vsel %vm533, %v491, 0.0
      %v834 = vsel %vm534, %v493, 0.0
      %v835 = vsel %vm535, %v495, 0.0
      %v836 = vsel %vm536, %v497, 0.0
      %v837 = vsel %vm537, %v499, 0.0
      %v838 = vsel %vm538, %v501, 0.0
      %v839 = vsel %vm539, %v503, 0.0
      %v840 = vsel %vm540, %v505, 0.0
      %v841 = vsel %vm541, %v507, 0.0
      %v842 = vsel %vm542, %v509, 0.0
      %v843 = vsel %vm543, %v511, 0.0
      %v844 = vadd.f32 %v828, %v829
      %v845 = vadd.f32 %v844, %v830
      %v846 = vadd.f32 %v845, %v831
      %v847 = vadd.f32 %v846, %v832
      %v848 = vadd.f32 %v847, %v833
      %v849 = vadd.f32 %v848, %v834
      %v850 = vadd.f32 %v849, %v835
      %v851 = vadd.f32 %v850, %v836
      %v852 = vadd.f32 %v851, %v837
      %v853 = vadd.f32 %v852, %v838
      %v854 = vadd.f32 %v853, %v839
      %v855 = vadd.f32 %v854, %v840
      %v856 = vadd.f32 %v855, %v841
      %v857 = vadd.f32 %v856, %v842
      %v858 = vadd.f32 %v857, %v843
      %v859 = vrot.slane %v858, 4
      %v860 = vadd.f32 %v858, %v859
      %v861 = vrot.slane %v860, 2
      %v862 = vadd.f32 %v860, %v861
      %v863 = vrot.slane %v862, 1
      %v864 = vadd.f32 %v862, %v863
      %v865 = vmul.f32 %v864, 0.125
      %866 = vst [vmem:[#allocation3] sm:$0x1] %v865
    $region21: #{association_matrix.1} parent=1 // pred_fallthru
      _
    // Predicated region
    $region22: #{association_matrix.1} parent=1 // pred_check
      _
    $region23: #{association_matrix.1} parent=1 // pred_check_branch
      %868 = sbr.rel (0) target = $region25
    $region24: #{association_matrix.1} parent=1 // pred_region
      _
    $region25: #{association_matrix.1} parent=1 // pred_fallthru
      _
    // Predicated region
    $region26: #{association_matrix.1} parent=1 // pred_check
      _
    $region27: #{association_matrix.1} parent=1 // pred_check_branch
      %870 = sbr.rel (0) target = $region29
    $region28: #{association_matrix.1} parent=1 // pred_region
      %s872 = ssub.s32 16, 16
      %873 = vsyncadd [#allocation4], %s872
      %s875 = sshll.u32 [#allocation3], 4
      %s876 = int_to_ptr.vmem [resolvable:$true] %s875
      %878 = dma.vmem_to_hbm [thread:$0]  %s876, 16, %s3, [#allocation4]
    $region29: #{association_matrix.1} parent=1 // pred_fallthru
      _
    // Predicated region
    $region30: #{association_matrix.1} parent=1 // pred_check
      _
    $region31: #{association_matrix.1} parent=1 // pred_check_branch
      %880 = sbr.rel (0) target = $region33
    $region32: #{association_matrix.1} parent=1 // pred_region
      _
    $region33: #{association_matrix.1} parent=1 // pred_fallthru
      _
    // Predicated region
    $region34: #{association_matrix.1} parent=1 // pred_check
      _
    $region35: #{association_matrix.1} parent=1 // pred_check_branch
      %882 = sbr.rel (0) target = $region37
    $region36: #{association_matrix.1} parent=1 // pred_region
      %883 = dma.done [#allocation4], 16
    $region37: #{association_matrix.1} parent=1 // pred_fallthru
      _
    %884 = vsyncpa [#allocation4], 1

</llo_original>
